<compile_context>
chip_gen: v6e
topology: v6e:2x2x1
jax: 0.10.0
libtpu: 0.0.40
codegen_flags: <defaults>
</compile_context>

<pallas_src>
import functools

import jax
import jax.numpy as jnp
from jax.experimental import pallas as pl
from jax.experimental.pallas import tpu as pltpu

EPS = 1e-5
LANE = 128  # fc1_units == fc2_units == lane-padded fc3 output width


def _critic_kernel(state_ref, action_ref,
                   w1_ref, w2a_ref, w2b_ref, w3_ref,
                   vecs_ref,              # (4, 128) f32: [gamma, beta, b2, b3_pad]
                   out_ref,               # (TB, 128) f32, lane-dense
                   stats_ref,             # (2, 128) f32 scratch: [sum, sumsq]
                   coef_ref,              # (2, 128) f32 scratch: [scale, shift]
                   *, inv_n):
    p = pl.program_id(0)   # 0: batch-statistics pass, 1: apply pass
    t = pl.program_id(1)   # batch tile

    # fc1 (bias elided: BatchNorm's batch-mean subtraction cancels any
    # per-feature constant; valid for training-mode batch statistics).
    h1 = jnp.dot(state_ref[...], w1_ref[...],
                 preferred_element_type=jnp.float32)

    # ---------------- pass 0: accumulate per-feature sum / sum-of-squares ---
    @pl.when(jnp.logical_and(p == 0, t == 0))
    def _init_stats():
        stats_ref[...] = jnp.zeros_like(stats_ref)

    @pl.when(p == 0)
    def _accumulate():
        # One pass over h1: sum and sumsq from the same vreg loads.
        stats_ref[0:1, :] += jnp.sum(h1, axis=0, keepdims=True)
        stats_ref[1:2, :] += jnp.sum(h1 * h1, axis=0, keepdims=True)

    # ---------------- pass 1: finalize BN coefs once, then apply ------------
    @pl.when(jnp.logical_and(p == 1, t == 0))
    def _finalize_coefs():
        mean = stats_ref[0:1, :] * inv_n
        # Clamp: E[h^2] - mean^2 can go slightly negative from cancellation.
        var = jnp.maximum(stats_ref[1:2, :] * inv_n - mean * mean, 0.0)
        gamma = vecs_ref[0:1, :]
        beta = vecs_ref[1:2, :]
        scale = gamma * jax.lax.rsqrt(var + EPS)
        coef_ref[0:1, :] = scale
        coef_ref[1:2, :] = beta - mean * scale

    @pl.when(p == 1)
    def _apply():
        scale = coef_ref[0:1, :]
        shift = coef_ref[1:2, :]
        # BN + ReLU, cast to bf16 for the MXU.
        x = jnp.maximum(h1 * scale + shift, 0.0).astype(jnp.bfloat16)

        # fc2 over cat([x, action], 1) == x @ W2a + action @ W2b  (no concat).
        h2 = (jnp.dot(x, w2a_ref[...], preferred_element_type=jnp.float32)
              + jnp.dot(action_ref[...], w2b_ref[...],
                        preferred_element_type=jnp.float32)
              + vecs_ref[2:3, :])
        h2 = jnp.maximum(h2, 0.0).astype(jnp.bfloat16)

        # fc3 (lane-padded to 128 outputs) + sigmoid, unmasked lane-dense store.
        h3 = (jnp.dot(h2, w3_ref[...], preferred_element_type=jnp.float32)
              + vecs_ref[3:4, :])
        out_ref[...] = jax.nn.sigmoid(h3)


def prepare_params(params):
    """One-time packing/casting (call once, outside the per-step path)."""
    f2, a = params["w3"].shape
    b3_pad = jnp.zeros((1, LANE), jnp.float32).at[:, :a].set(params["b3"])
    w3_pad = jnp.zeros((f2, LANE), jnp.float32).at[:, :a].set(params["w3"])
    vecs = jnp.concatenate(
        [params["gamma"], params["beta"], params["b2"], b3_pad],
        axis=0).astype(jnp.float32)
    return {
        "w1": params["w1"].astype(jnp.bfloat16),
        "w2a": params["w2a"].astype(jnp.bfloat16),
        "w2b": params["w2b"].astype(jnp.bfloat16),
        "w3": w3_pad.astype(jnp.bfloat16),
        "vecs": vecs,
    }


@functools.partial(jax.jit, static_argnames=("block_b",))
def critic_forward(state, action, packed, block_b=None):
    B, S = state.shape
    A = action.shape[1]
    F1 = packed["w1"].shape[1]
    assert F1 == LANE and packed["w2a"].shape[1] == LANE

    # Batch tile: 1024 rows for large batches (fits comfortably in scoped VMEM
    # on v5e/v6e/v7x incl. double buffering), else the whole batch rounded up
    # to the f32 sublane multiple of 8.
    if block_b is None:
        block_b = 1024 if B >= 1024 else max(8, -(-B // 8) * 8)
    assert block_b % 8 == 0
    nt = -(-B // block_b)
    b_pad = nt * block_b

    state_b = state.astype(jnp.bfloat16)
    action_b = action.astype(jnp.bfloat16)
    if b_pad != B:
        # Zero-padded rows contribute exactly 0 to the BN sums (no fc1 bias);
        # statistics divide by the true batch size below.
        state_b = jnp.pad(state_b, ((0, b_pad - B), (0, 0)))
        action_b = jnp.pad(action_b, ((0, b_pad - B), (0, 0)))

    kernel = functools.partial(_critic_kernel, inv_n=1.0 / B)
    resident = lambda p, t: (0, 0)          # weights: DMA once, stay in VMEM
    stream_p1 = lambda p, t: (t * p, 0)     # only advances during pass 1

    cost = pl.CostEstimate(
        flops=2 * b_pad * LANE * (2 * S + LANE + A + LANE),
        transcendentals=b_pad * LANE,
        bytes_accessed=(2 * b_pad * S * 2 + b_pad * A * 2
                        + (S + 2 * LANE + A) * LANE * 2
                        + 4 * LANE * 4 + b_pad * LANE * 4),
    )

    out_full = pl.pallas_call(
        kernel,
        out_shape=jax.ShapeDtypeStruct((b_pad, LANE), jnp.float32),
        grid_spec=pltpu.PrefetchScalarGridSpec(
            num_scalar_prefetch=0,
            grid=(2, nt),
            in_specs=[
                pl.BlockSpec((block_b, S), lambda p, t: (t, 0)),   # state
                pl.BlockSpec((block_b, A), stream_p1),             # action
                pl.BlockSpec((S, LANE), resident),                 # w1
                pl.BlockSpec((LANE, LANE), resident),              # w2a
                pl.BlockSpec((A, LANE), resident),                 # w2b
                pl.BlockSpec((LANE, LANE), resident),              # w3 (padded)
                pl.BlockSpec((4, LANE), resident),                 # vecs
            ],
            out_specs=pl.BlockSpec((block_b, LANE), stream_p1),
            scratch_shapes=[pltpu.VMEM((2, LANE), jnp.float32),    # sum/sumsq
                            pltpu.VMEM((2, LANE), jnp.float32)],   # scale/shift
        ),
        compiler_params=pltpu.CompilerParams(
            dimension_semantics=("arbitrary", "arbitrary"),
            vmem_limit_bytes=32 * 1024 * 1024),
        cost_estimate=cost,
    )(state_b, action_b, packed["w1"], packed["w2a"], packed["w2b"],
      packed["w3"], packed["vecs"])

    # Slice stays inside the jit so it fuses with the call's consumer.
    return out_full[:B, :A]


def init_params(key, state_size, action_size, fc1_units=128, fc2_units=128):
    ks = jax.random.split(key, 6)
    # PyTorch reset_parameters(): weights uniform(-0.003, 0.003)
    w1 = jax.random.uniform(ks[0], (state_size, fc1_units),
                            minval=-3e-3, maxval=3e-3, dtype=jnp.float32)
    w2 = jax.random.uniform(ks[1], (fc1_units + action_size, fc2_units),
                            minval=-3e-3, maxval=3e-3, dtype=jnp.float32)
    w3 = jax.random.uniform(ks[2], (fc2_units, action_size),
                            minval=-3e-3, maxval=3e-3, dtype=jnp.float32)
    # Biases keep PyTorch default Linear init: U(-1/sqrt(fan_in), 1/sqrt(fan_in))
    b1 = jax.random.uniform(ks[3], (1, fc1_units), dtype=jnp.float32,
                            minval=-1.0 / state_size ** 0.5,
                            maxval=1.0 / state_size ** 0.5)
    b2 = jax.random.uniform(ks[4], (1, fc2_units), dtype=jnp.float32,
                            minval=-1.0 / (fc1_units + action_size) ** 0.5,
                            maxval=1.0 / (fc1_units + action_size) ** 0.5)
    b3 = jax.random.uniform(ks[5], (1, action_size), dtype=jnp.float32,
                            minval=-1.0 / fc2_units ** 0.5,
                            maxval=1.0 / fc2_units ** 0.5)
    return {
        "w1": w1, "b1": b1,                              # b1: reference only (BN cancels it)
        "gamma": jnp.ones((1, fc1_units), jnp.float32),  # BatchNorm1d weight
        "beta": jnp.zeros((1, fc1_units), jnp.float32),  # BatchNorm1d bias
        "w2a": w2[:fc1_units, :], "w2b": w2[fc1_units:, :], "b2": b2,
        "w3": w3, "b3": b3,
    }


def critic_reference(state, action, params):
    """Pure-JAX f32 reference matching the PyTorch module (incl. fc1 bias)."""
    h1 = state @ params["w1"] + params["b1"]
    mean = jnp.mean(h1, axis=0, keepdims=True)
    var = jnp.mean((h1 - mean) ** 2, axis=0, keepdims=True)
    x = jnp.maximum((h1 - mean) / jnp.sqrt(var + EPS) * params["gamma"]
                    + params["beta"], 0.0)
    h2 = jnp.maximum(x @ params["w2a"] + action @ params["w2b"]
                     + params["b2"], 0.0)
    return jax.nn.sigmoid(h2 @ params["w3"] + params["b3"])


if __name__ == "__main__":
    key = jax.random.PRNGKey(0)
    k_state, k_action, k_params = jax.random.split(key, 3)

    STATE, ACTION = 32, 16
    params = init_params(k_params, STATE, ACTION)
    packed = prepare_params(params)   # one-time packing, outside the hot path

    # Case 1: small single-tile batch.
    B = 8
    state = jax.random.normal(k_state, (B, STATE), dtype=jnp.float32)
    action = jax.random.normal(k_action, (B, ACTION), dtype=jnp.float32)
    out = jax.block_until_ready(critic_forward(state, action, packed))
    ref = critic_reference(state, action, params)
    assert out.shape == (B, ACTION)
    err = float(jnp.max(jnp.abs(out - ref)))
    assert jnp.allclose(out, ref, atol=5e-3, rtol=5e-3), err   # bf16 matmuls

    # Case 2: multi-tile grid with a padded final tile (exercises the two-pass
    # BatchNorm accumulation and true-batch-size normalization).
    B2 = 20
    state2 = jax.random.normal(jax.random.PRNGKey(1), (B2, STATE), jnp.float32)
    action2 = jax.random.normal(jax.random.PRNGKey(2), (B2, ACTION), jnp.float32)
    out2 = jax.block_until_ready(
        critic_forward(state2, action2, packed, block_b=8))
    ref2 = critic_reference(state2, action2, params)
    assert out2.shape == (B2, ACTION)
    err2 = float(jnp.max(jnp.abs(out2 - ref2)))
    assert jnp.allclose(out2, ref2, atol=5e-3, rtol=5e-3), err2

    print("KERNEL_OK")
</pallas_src>

<mosaic_0001>
module attributes {stable_mosaic.version = 11 : i64} {
  func.func @_critic_kernel(%arg0: i32, %arg1: i32, %arg2: memref<8x32xbf16, #tpu.memory_space<vmem>>, %arg3: memref<8x16xbf16, #tpu.memory_space<vmem>>, %arg4: memref<32x128xbf16, #tpu.memory_space<vmem>>, %arg5: memref<128x128xbf16, #tpu.memory_space<vmem>>, %arg6: memref<16x128xbf16, #tpu.memory_space<vmem>>, %arg7: memref<128x128xbf16, #tpu.memory_space<vmem>>, %arg8: memref<4x128xf32, #tpu.memory_space<vmem>>, %arg9: memref<8x128xf32, #tpu.memory_space<vmem>>, %arg10: memref<2x128xf32, #tpu.memory_space<vmem>>, %arg11: memref<2x128xf32, #tpu.memory_space<vmem>>) attributes {dimension_semantics = [#tpu.dimension_semantics<arbitrary>, #tpu.dimension_semantics<arbitrary>], iteration_bounds = array<i64: 2, 1>, scalar_prefetch = 0 : i64, scratch_operands = 2 : i64, tpu.core_type = #tpu.core_type<tc>, window_params = [{transform_indices = @transform_0, window_bounds = array<i64: 8, 32>}, {transform_indices = @transform_1, window_bounds = array<i64: 8, 16>}, {pipeline_mode = #tpu.pipeline_mode<synchronous>, transform_indices = @transform_2, window_bounds = array<i64: 32, 128>}, {pipeline_mode = #tpu.pipeline_mode<synchronous>, transform_indices = @transform_3, window_bounds = array<i64: 128, 128>}, {pipeline_mode = #tpu.pipeline_mode<synchronous>, transform_indices = @transform_4, window_bounds = array<i64: 16, 128>}, {pipeline_mode = #tpu.pipeline_mode<synchronous>, transform_indices = @transform_5, window_bounds = array<i64: 128, 128>}, {pipeline_mode = #tpu.pipeline_mode<synchronous>, transform_indices = @transform_6, window_bounds = array<i64: 4, 128>}, {transform_indices = @transform_7, window_bounds = array<i64: 8, 128>}]} {
    %c0 = arith.constant 0 : index
    %c0_0 = arith.constant 0 : index
    %0 = vector.load %arg2[%c0, %c0_0] : memref<8x32xbf16, #tpu.memory_space<vmem>>, vector<8x32xbf16>
    %c0_1 = arith.constant 0 : index
    %c0_2 = arith.constant 0 : index
    %1 = vector.load %arg4[%c0_1, %c0_2] : memref<32x128xbf16, #tpu.memory_space<vmem>>, vector<32x128xbf16>
    %cst = arith.constant dense<0.000000e+00> : vector<8x128xf32>
    %2 = tpu.matmul %0, %1, %cst {dimension_numbers = #tpu.dot_dimension_numbers<[1], [0], [0], [1], [0, 0, 1, 1], [], []>} : vector<8x32xbf16>, vector<32x128xbf16>, vector<8x128xf32> -> vector<8x128xf32>
    %c0_i32 = arith.constant 0 : i32
    %3 = arith.cmpi eq, %arg0, %c0_i32 : i32
    %c0_i32_3 = arith.constant 0 : i32
    %4 = arith.cmpi eq, %arg1, %c0_i32_3 : i32
    %5 = arith.andi %3, %4 : i1
    %6 = arith.extui %5 : i1 to i32
    %c0_i32_4 = arith.constant 0 : i32
    %7 = arith.cmpi ne, %6, %c0_i32_4 : i32
    scf.if %7 {
      %cst_11 = arith.constant 0.000000e+00 : f32
      %19 = vector.broadcast %cst_11 : f32 to vector<2x128xf32>
      %c0_12 = arith.constant 0 : index
      %c0_13 = arith.constant 0 : index
      %20 = vector.load %arg10[%c0_12, %c0_13] : memref<2x128xf32, #tpu.memory_space<vmem>>, vector<2x128xf32>
      tpu.vector_store %arg10[%c0_12, %c0_13], %19 {strides = array<i32>} : memref<2x128xf32, #tpu.memory_space<vmem>>, vector<2x128xf32>,
    } else {
    }
    %c0_i32_5 = arith.constant 0 : i32
    %8 = arith.cmpi eq, %arg0, %c0_i32_5 : i32
    %9 = arith.extui %8 : i1 to i32
    %c0_i32_6 = arith.constant 0 : i32
    %10 = arith.cmpi ne, %9, %c0_i32_6 : i32
    scf.if %10 {
      %c0_11 = arith.constant 0 : index
      %c0_12 = arith.constant 0 : index
      %19 = vector.load %arg10[%c0_11, %c0_12] : memref<2x128xf32, #tpu.memory_space<vmem>>, vector<1x128xf32>
      %cst_13 = arith.constant dense<0.000000e+00> : vector<128xf32>
      %20 = vector.multi_reduction <add>, %2, %cst_13 [0] : vector<8x128xf32> to vector<128xf32>
      %21 = vector.shape_cast %20 : vector<128xf32> to vector<1x128xf32>
      %22 = arith.addf %19, %21 : vector<1x128xf32>
      %c0_14 = arith.constant 0 : index
      %c0_15 = arith.constant 0 : index
      %23 = vector.load %arg10[%c0_14, %c0_15] : memref<2x128xf32, #tpu.memory_space<vmem>>, vector<1x128xf32>
      tpu.vector_store %arg10[%c0_14, %c0_15], %22 {strides = array<i32>} : memref<2x128xf32, #tpu.memory_space<vmem>>, vector<1x128xf32>,
      %c1 = arith.constant 1 : index
      %c0_16 = arith.constant 0 : index
      %24 = vector.load %arg10[%c1, %c0_16] : memref<2x128xf32, #tpu.memory_space<vmem>>, vector<1x128xf32>
      %25 = arith.mulf %2, %2 : vector<8x128xf32>
      %cst_17 = arith.constant dense<0.000000e+00> : vector<128xf32>
      %26 = vector.multi_reduction <add>, %25, %cst_17 [0] : vector<8x128xf32> to vector<128xf32>
      %27 = vector.shape_cast %26 : vector<128xf32> to vector<1x128xf32>
      %28 = arith.addf %24, %27 : vector<1x128xf32>
      %c1_18 = arith.constant 1 : index
      %c0_19 = arith.constant 0 : index
      %29 = vector.load %arg10[%c1_18, %c0_19] : memref<2x128xf32, #tpu.memory_space<vmem>>, vector<1x128xf32>
      tpu.vector_store %arg10[%c1_18, %c0_19], %28 {strides = array<i32>} : memref<2x128xf32, #tpu.memory_space<vmem>>, vector<1x128xf32>,
    } else {
    }
    %c1_i32 = arith.constant 1 : i32
    %11 = arith.cmpi eq, %arg0, %c1_i32 : i32
    %c0_i32_7 = arith.constant 0 : i32
    %12 = arith.cmpi eq, %arg1, %c0_i32_7 : i32
    %13 = arith.andi %11, %12 : i1
    %14 = arith.extui %13 : i1 to i32
    %c0_i32_8 = arith.constant 0 : i32
    %15 = arith.cmpi ne, %14, %c0_i32_8 : i32
    scf.if %15 {
      %c0_11 = arith.constant 0 : index
      %c0_12 = arith.constant 0 : index
      %19 = vector.load %arg10[%c0_11, %c0_12] : memref<2x128xf32, #tpu.memory_space<vmem>>, vector<1x128xf32>
      %cst_13 = arith.constant 1.250000e-01 : f32
      %20 = vector.broadcast %cst_13 : f32 to vector<1x128xf32>
      %21 = arith.mulf %19, %20 : vector<1x128xf32>
      %c1 = arith.constant 1 : index
      %c0_14 = arith.constant 0 : index
      %22 = vector.load %arg10[%c1, %c0_14] : memref<2x128xf32, #tpu.memory_space<vmem>>, vector<1x128xf32>
      %cst_15 = arith.constant 1.250000e-01 : f32
      %23 = vector.broadcast %cst_15 : f32 to vector<1x128xf32>
      %24 = arith.mulf %22, %23 : vector<1x128xf32>
      %25 = arith.mulf %21, %21 : vector<1x128xf32>
      %26 = arith.subf %24, %25 : vector<1x128xf32>
      %cst_16 = arith.constant 0.000000e+00 : f32
      %27 = vector.broadcast %cst_16 : f32 to vector<1x128xf32>
      %28 = arith.maximumf %26, %27 : vector<1x128xf32>
      %c0_17 = arith.constant 0 : index
      %c0_18 = arith.constant 0 : index
      %29 = vector.load %arg8[%c0_17, %c0_18] : memref<4x128xf32, #tpu.memory_space<vmem>>, vector<1x128xf32>
      %c1_19 = arith.constant 1 : index
      %c0_20 = arith.constant 0 : index
      %30 = vector.load %arg8[%c1_19, %c0_20] : memref<4x128xf32, #tpu.memory_space<vmem>>, vector<1x128xf32>
      %cst_21 = arith.constant 9.99999974E-6 : f32
      %31 = vector.broadcast %cst_21 : f32 to vector<1x128xf32>
      %32 = arith.addf %28, %31 : vector<1x128xf32>
      %33 = math.rsqrt %32 : vector<1x128xf32>
      %34 = arith.mulf %29, %33 : vector<1x128xf32>
      %c0_22 = arith.constant 0 : index
      %c0_23 = arith.constant 0 : index
      %35 = vector.load %arg11[%c0_22, %c0_23] : memref<2x128xf32, #tpu.memory_space<vmem>>, vector<1x128xf32>
      tpu.vector_store %arg11[%c0_22, %c0_23], %34 {strides = array<i32>} : memref<2x128xf32, #tpu.memory_space<vmem>>, vector<1x128xf32>,
      %36 = arith.mulf %21, %34 : vector<1x128xf32>
      %37 = arith.subf %30, %36 : vector<1x128xf32>
      %c1_24 = arith.constant 1 : index
      %c0_25 = arith.constant 0 : index
      %38 = vector.load %arg11[%c1_24, %c0_25] : memref<2x128xf32, #tpu.memory_space<vmem>>, vector<1x128xf32>
      tpu.vector_store %arg11[%c1_24, %c0_25], %37 {strides = array<i32>} : memref<2x128xf32, #tpu.memory_space<vmem>>, vector<1x128xf32>,
    } else {
    }
    %c1_i32_9 = arith.constant 1 : i32
    %16 = arith.cmpi eq, %arg0, %c1_i32_9 : i32
    %17 = arith.extui %16 : i1 to i32
    %c0_i32_10 = arith.constant 0 : i32
    %18 = arith.cmpi ne, %17, %c0_i32_10 : i32
    scf.if %18 {
      %c0_11 = arith.constant 0 : index
      %c0_12 = arith.constant 0 : index
      %19 = vector.load %arg11[%c0_11, %c0_12] : memref<2x128xf32, #tpu.memory_space<vmem>>, vector<1x128xf32>
      %c1 = arith.constant 1 : index
      %c0_13 = arith.constant 0 : index
      %20 = vector.load %arg11[%c1, %c0_13] : memref<2x128xf32, #tpu.memory_space<vmem>>, vector<1x128xf32>
      %21 = vector.broadcast %19 : vector<1x128xf32> to vector<8x128xf32>
      %22 = arith.mulf %2, %21 : vector<8x128xf32>
      %23 = vector.broadcast %20 : vector<1x128xf32> to vector<8x128xf32>
      %24 = arith.addf %22, %23 : vector<8x128xf32>
      %cst_14 = arith.constant 0.000000e+00 : f32
      %25 = vector.broadcast %cst_14 : f32 to vector<8x128xf32>
      %26 = arith.maximumf %24, %25 : vector<8x128xf32>
      %27 = arith.truncf %26 : vector<8x128xf32> to vector<8x128xbf16>
      %c0_15 = arith.constant 0 : index
      %c0_16 = arith.constant 0 : index
      %28 = vector.load %arg5[%c0_15, %c0_16] : memref<128x128xbf16, #tpu.memory_space<vmem>>, vector<128x128xbf16>
      %cst_17 = arith.constant dense<0.000000e+00> : vector<8x128xf32>
      %29 = tpu.matmul %27, %28, %cst_17 {dimension_numbers = #tpu.dot_dimension_numbers<[1], [0], [0], [1], [0, 0, 1, 1], [], []>} : vector<8x128xbf16>, vector<128x128xbf16>, vector<8x128xf32> -> vector<8x128xf32>
      %c0_18 = arith.constant 0 : index
      %c0_19 = arith.constant 0 : index
      %30 = vector.load %arg3[%c0_18, %c0_19] : memref<8x16xbf16, #tpu.memory_space<vmem>>, vector<8x16xbf16>
      %c0_20 = arith.constant 0 : index
      %c0_21 = arith.constant 0 : index
      %31 = vector.load %arg6[%c0_20, %c0_21] : memref<16x128xbf16, #tpu.memory_space<vmem>>, vector<16x128xbf16>
      %cst_22 = arith.constant dense<0.000000e+00> : vector<8x128xf32>
      %32 = tpu.matmul %30, %31, %cst_22 {dimension_numbers = #tpu.dot_dimension_numbers<[1], [0], [0], [1], [0, 0, 1, 1], [], []>} : vector<8x16xbf16>, vector<16x128xbf16>, vector<8x128xf32> -> vector<8x128xf32>
      %33 = arith.addf %29, %32 : vector<8x128xf32>
      %c2 = arith.constant 2 : index
      %c0_23 = arith.constant 0 : index
      %34 = vector.load %arg8[%c2, %c0_23] : memref<4x128xf32, #tpu.memory_space<vmem>>, vector<1x128xf32>
      %35 = vector.broadcast %34 : vector<1x128xf32> to vector<8x128xf32>
      %36 = arith.addf %33, %35 : vector<8x128xf32>
      %cst_24 = arith.constant 0.000000e+00 : f32
      %37 = vector.broadcast %cst_24 : f32 to vector<8x128xf32>
      %38 = arith.maximumf %36, %37 : vector<8x128xf32>
      %39 = arith.truncf %38 : vector<8x128xf32> to vector<8x128xbf16>
      %c0_25 = arith.constant 0 : index
      %c0_26 = arith.constant 0 : index
      %40 = vector.load %arg7[%c0_25, %c0_26] : memref<128x128xbf16, #tpu.memory_space<vmem>>, vector<128x128xbf16>
      %cst_27 = arith.constant dense<0.000000e+00> : vector<8x128xf32>
      %41 = tpu.matmul %39, %40, %cst_27 {dimension_numbers = #tpu.dot_dimension_numbers<[1], [0], [0], [1], [0, 0, 1, 1], [], []>} : vector<8x128xbf16>, vector<128x128xbf16>, vector<8x128xf32> -> vector<8x128xf32>
      %c3 = arith.constant 3 : index
      %c0_28 = arith.constant 0 : index
      %42 = vector.load %arg8[%c3, %c0_28] : memref<4x128xf32, #tpu.memory_space<vmem>>, vector<1x128xf32>
      %43 = vector.broadcast %42 : vector<1x128xf32> to vector<8x128xf32>
      %44 = arith.addf %41, %43 : vector<8x128xf32>
      %45 = arith.negf %44 : vector<8x128xf32>
      %46 = math.exp %45 : vector<8x128xf32>
      %cst_29 = arith.constant 1.000000e+00 : f32
      %47 = vector.broadcast %cst_29 : f32 to vector<8x128xf32>
      %48 = arith.addf %47, %46 : vector<8x128xf32>
      %49 = arith.divf %47, %48 : vector<8x128xf32>
      %c0_30 = arith.constant 0 : index
      %c0_31 = arith.constant 0 : index
      %50 = vector.load %arg9[%c0_30, %c0_31] : memref<8x128xf32, #tpu.memory_space<vmem>>, vector<8x128xf32>
      tpu.vector_store %arg9[%c0_30, %c0_31], %49 {strides = array<i32>} : memref<8x128xf32, #tpu.memory_space<vmem>>, vector<8x128xf32>,
    } else {
    }
    return
  }
  func.func @transform_0(%arg0: i32, %arg1: i32) -> (i32, i32) {
    %c0_i32 = arith.constant 0 : i32
    %c0_i32_0 = arith.constant 0 : i32
    return %arg1, %c0_i32 : i32, i32
  }
  func.func @transform_1(%arg0: i32, %arg1: i32) -> (i32, i32) {
    %0 = arith.muli %arg1, %arg0 : i32
    %c0_i32 = arith.constant 0 : i32
    %c0_i32_0 = arith.constant 0 : i32
    return %0, %c0_i32 : i32, i32
  }
  func.func @transform_2(%arg0: i32, %arg1: i32) -> (i32, i32) {
    %c0_i32 = arith.constant 0 : i32
    %c0_i32_0 = arith.constant 0 : i32
    %c0_i32_1 = arith.constant 0 : i32
    return %c0_i32, %c0_i32_0 : i32, i32
  }
  func.func @transform_3(%arg0: i32, %arg1: i32) -> (i32, i32) {
    %c0_i32 = arith.constant 0 : i32
    %c0_i32_0 = arith.constant 0 : i32
    %c0_i32_1 = arith.constant 0 : i32
    return %c0_i32, %c0_i32_0 : i32, i32
  }
  func.func @transform_4(%arg0: i32, %arg1: i32) -> (i32, i32) {
    %c0_i32 = arith.constant 0 : i32
    %c0_i32_0 = arith.constant 0 : i32
    %c0_i32_1 = arith.constant 0 : i32
    return %c0_i32, %c0_i32_0 : i32, i32
  }
  func.func @transform_5(%arg0: i32, %arg1: i32) -> (i32, i32) {
    %c0_i32 = arith.constant 0 : i32
    %c0_i32_0 = arith.constant 0 : i32
    %c0_i32_1 = arith.constant 0 : i32
    return %c0_i32, %c0_i32_0 : i32, i32
  }
  func.func @transform_6(%arg0: i32, %arg1: i32) -> (i32, i32) {
    %c0_i32 = arith.constant 0 : i32
    %c0_i32_0 = arith.constant 0 : i32
    %c0_i32_1 = arith.constant 0 : i32
    return %c0_i32, %c0_i32_0 : i32, i32
  }
  func.func @transform_7(%arg0: i32, %arg1: i32) -> (i32, i32) {
    %0 = arith.muli %arg1, %arg0 : i32
    %c0_i32 = arith.constant 0 : i32
    %c0_i32_0 = arith.constant 0 : i32
    return %0, %c0_i32 : i32, i32
  }
}

</mosaic_0001>

<llo_original>
// kernel: critic_forward.1
$region0: #{critic_forward.1}
  #allocation0 [shape = 'u32[]', space=smem, size = 0x4, offset = 0x4, fixed_abs, tag = 'smem constant byte address 0x4 - core index']
  #allocation1 [shape = 'u32[144,128]{1,0:T(1,128)}', space=vmem, size = 0x12000, scoped, tag = 'internal scratch']
  #allocation2 [shape = 'f32[2,128]{1,0:T(2,128)}', space=vmem, size = 0x400, scoped, tag = 'scratch operand']
  #allocation3 [shape = 'f32[2,128]{1,0:T(2,128)}', space=vmem, size = 0x400, scoped, tag = 'scratch operand']
  %s0 = inlined_call_operand.vmem [shape: bf16[8,32], index: 0, kind: input, shape index: {}]
  %s1 = inlined_call_operand.vmem [shape: bf16[8,16], index: 1, kind: input, shape index: {}]
  %s2 = inlined_call_operand.vmem [shape: bf16[32,128], index: 2, kind: input, shape index: {}]
  %s3 = inlined_call_operand.hbm [shape: bf16[128,128], index: 3, kind: input, shape index: {}]
  %s4 = inlined_call_operand.vmem [shape: bf16[16,128], index: 4, kind: input, shape index: {}]
  %s5 = inlined_call_operand.hbm [shape: bf16[128,128], index: 5, kind: input, shape index: {}]
  %s6 = inlined_call_operand.vmem [shape: f32[4,128], index: 6, kind: input, shape index: {}]
  %s7 = inlined_call_operand.hbm [shape: f32[8,128], index: 7, kind: output, shape index: {}]
  %s8 = sld [smem:[#allocation0]]
  $region85: #{critic_forward.1} parent=0
    _
  %s10 = ssub.s32 1, %s8
  %s11 = scalar_select 0, %s10, %s8
  $region1: #{critic_forward.1} parent=0
    #allocation4 [shape = 'u8[32768]{0}', space=vmem, size = 0x8000, scoped, tag = 'input window, operand 3, single buffered']
    #allocation5 [shape = 's32[2]{0}', space=sflag, size = 0x8, scoped, tag = 'scoped memory for critic_forward.1']
    #allocation6 [shape = 's32[2]{0}', space=sflag, size = 0x8, scoped, tag = 'scoped memory for critic_forward.1']
    #allocation7 [shape = 'u8[32768]{0}', space=vmem, size = 0x8000, scoped, tag = 'input window, operand 5, single buffered']
    #allocation8 [shape = 's32[1]{0}', space=sflag, size = 0x4, scoped, tag = 'scoped memory for critic_forward.1']
    #allocation9 [shape = 'u8[8192]{0}', space=vmem, size = 0x2000, scoped, tag = 'output window, operand 0']
    %12 = vsyncpa [#allocation5], 0
    %13 = vsyncpa [#allocation8], 0
    %14 = vsyncpa [#allocation6], 0
    %s15 = scalar_lea.sflag [#allocation6], 1
    %16 = vsyncpa %s15, 0
    loop: start=0, step=1, limit=4
    $region2: #{critic_forward.1} parent=1 // loop_pre_header
      _
    $region3: #{critic_forward.1} parent=1 // loop_header
      %s18 = sphi 0, %s22
      %p19 = scmp.ge.s32.totalorder %s18, 4
      %s25 = sphi 0, %s37
      %s26 = sphi 0, %s33
      %s27 = sphi 0, %s25
      %s28 = sphi 0, %s26
      %s29 = sphi 0, %s27
      %s30 = sphi 0, %s28
      %s40 = sphi 0, %s42
      %s43 = sphi 0, %s40
      %s44 = sphi 0, %s43
      %s60 = sphi 0, %s44
      %s68 = sphi 0, %s70
      %s71 = sphi 0, %s68
      %s72 = sphi 0, %s71
      %s88 = sphi 0, %s72
      %s92 = sphi 0, %s92
      %s94 = sphi 0, %s92
      %s95 = sphi 0, %s94
      %s109 = sphi 0, %s95
      %s113 = sphi 0, %s113
      %s115 = sphi 0, %s113
      %s116 = sphi 0, %s115
      %s130 = sphi 0, %s116
      %s134 = sphi 0, %s134
      %s136 = sphi 0, %s134
      %s137 = sphi 0, %s136
      %s151 = sphi 0, %s137
      %s155 = sphi 0, %s155
      %s157 = sphi 0, %s155
      %s158 = sphi 0, %s157
      %s172 = sphi 0, %s158
      %s176 = sphi 0, %s176
      %s178 = sphi 0, %s176
      %s179 = sphi 0, %s178
      %s193 = sphi 0, %s179
      %s201 = sphi 0, %s203
      %s204 = sphi 0, %s201
      %s205 = sphi 0, %s204
      %s221 = sphi 0, %s205
    $region4: #{critic_forward.1} parent=1 // loop_header_branch
      %21 = sbr.rel (%p19) target = $region8
    $region5: #{critic_forward.1} parent=1 // loop_body
      %s23 = ssub.s32 %s18, 1
      %s24 = ssub.s32 %s18, 2
      %s31 = sadd.s32 1, %s26
      %p32 = scmp.ge.s32.totalorder %s31, 1
      %s33 = scalar_select %p32, 0, %s31
      %s34 = sadd.s32 1, %s25
      %s35 = scalar_select %p32, %s34, %s25
      %p36 = scmp.ge.s32.totalorder %s35, 2
      %s37 = scalar_select %p36, 0, %s35
      %s38 = ssub.s32 %s26, %s33
      %p39 = scmp.eq.s32.totalorder %s38, 0
      %s41 = sadd.s32 %s40, 1
      %s42 = scalar_select %p39, %s40, %s41
      %p45 = pneg %p39
      %p46 = scmp.eq.s32.totalorder %s18, 1
      %p47 = por %p45, %p46
      %p48 = scmp.ne.s32.totalorder %s40, %s43
      %p49 = scmp.eq.s32.totalorder %s18, 0
      %p50 = por %p48, %p49
      %p51 = scmp.ne.s32.totalorder %s40, %s43
      %p52 = scmp.eq.s32.totalorder %s23, 1
      %p53 = por %p51, %p52
      %p54 = scmp.ne.s32.totalorder %s43, %s44
      %p55 = scmp.eq.s32.totalorder %s23, 0
      %p56 = por %p54, %p55
      %p57 = scmp.ne.s32.totalorder %s43, %s44
      %p58 = scmp.eq.s32.totalorder %s24, 1
      %p59 = por %p57, %p58
      %p61 = scmp.ne.s32.totalorder %s44, %s60
      %p62 = scmp.eq.s32.totalorder %s24, 0
      %p63 = por %p61, %p62
      %s64 = smul.u32 %s26, %s25
      %s65 = smul.u32 %s33, %s37
      %s66 = ssub.s32 %s64, %s65
      %p67 = scmp.eq.s32.totalorder %s66, 0
      %s69 = sadd.s32 %s68, 1
      %s70 = scalar_select %p67, %s68, %s69
      %p73 = pneg %p67
      %p74 = scmp.eq.s32.totalorder %s18, 1
      %p75 = por %p73, %p74
      %p76 = scmp.ne.s32.totalorder %s68, %s71
      %p77 = scmp.eq.s32.totalorder %s18, 0
      %p78 = por %p76, %p77
      %p79 = scmp.ne.s32.totalorder %s68, %s71
      %p80 = scmp.eq.s32.totalorder %s23, 1
      %p81 = por %p79, %p80
      %p82 = scmp.ne.s32.totalorder %s71, %s72
      %p83 = scmp.eq.s32.totalorder %s23, 0
      %p84 = por %p82, %p83
      %p85 = scmp.ne.s32.totalorder %s71, %s72
      %p86 = scmp.eq.s32.totalorder %s24, 1
      %p87 = por %p85, %p86
      %p89 = scmp.ne.s32.totalorder %s72, %s88
      %p90 = scmp.eq.s32.totalorder %s24, 0
      %p91 = por %p89, %p90
      %s93 = sadd.s32 %s92, 1
      %p96 = scmp.eq.s32.totalorder %s18, 1
      %p97 = scmp.ne.s32.totalorder %s92, %s94
      %p98 = scmp.eq.s32.totalorder %s18, 0
      %p99 = por %p97, %p98
      %p100 = scmp.ne.s32.totalorder %s92, %s94
      %p101 = scmp.eq.s32.totalorder %s23, 1
      %p102 = por %p100, %p101
      %p103 = scmp.ne.s32.totalorder %s94, %s95
      %p104 = scmp.eq.s32.totalorder %s23, 0
      %p105 = por %p103, %p104
      %p106 = scmp.ne.s32.totalorder %s94, %s95
      %p107 = scmp.eq.s32.totalorder %s24, 1
      %p108 = por %p106, %p107
      %p110 = scmp.ne.s32.totalorder %s95, %s109
      %p111 = scmp.eq.s32.totalorder %s24, 0
      %p112 = por %p110, %p111
      %s114 = sadd.s32 %s113, 1
      %p117 = scmp.eq.s32.totalorder %s18, 1
      %p118 = scmp.ne.s32.totalorder %s113, %s115
      %p119 = scmp.eq.s32.totalorder %s18, 0
      %p120 = por %p118, %p119
      %p121 = scmp.ne.s32.totalorder %s113, %s115
      %p122 = scmp.eq.s32.totalorder %s23, 1
      %p123 = por %p121, %p122
      %p124 = scmp.ne.s32.totalorder %s115, %s116
      %p125 = scmp.eq.s32.totalorder %s23, 0
      %p126 = por %p124, %p125
      %p127 = scmp.ne.s32.totalorder %s115, %s116
      %p128 = scmp.eq.s32.totalorder %s24, 1
      %p129 = por %p127, %p128
      %p131 = scmp.ne.s32.totalorder %s116, %s130
      %p132 = scmp.eq.s32.totalorder %s24, 0
      %p133 = por %p131, %p132
      %s135 = sadd.s32 %s134, 1
      %p138 = scmp.eq.s32.totalorder %s18, 1
      %p139 = scmp.ne.s32.totalorder %s134, %s136
      %p140 = scmp.eq.s32.totalorder %s18, 0
      %p141 = por %p139, %p140
      %p142 = scmp.ne.s32.totalorder %s134, %s136
      %p143 = scmp.eq.s32.totalorder %s23, 1
      %p144 = por %p142, %p143
      %p145 = scmp.ne.s32.totalorder %s136, %s137
      %p146 = scmp.eq.s32.totalorder %s23, 0
      %p147 = por %p145, %p146
      %p148 = scmp.ne.s32.totalorder %s136, %s137
      %p149 = scmp.eq.s32.totalorder %s24, 1
      %p150 = por %p148, %p149
      %p152 = scmp.ne.s32.totalorder %s137, %s151
      %p153 = scmp.eq.s32.totalorder %s24, 0
      %p154 = por %p152, %p153
      %s156 = sadd.s32 %s155, 1
      %p159 = scmp.eq.s32.totalorder %s18, 1
      %p160 = scmp.ne.s32.totalorder %s155, %s157
      %p161 = scmp.eq.s32.totalorder %s18, 0
      %p162 = por %p160, %p161
      %p163 = scmp.ne.s32.totalorder %s155, %s157
      %p164 = scmp.eq.s32.totalorder %s23, 1
      %p165 = por %p163, %p164
      %p166 = scmp.ne.s32.totalorder %s157, %s158
      %p167 = scmp.eq.s32.totalorder %s23, 0
      %p168 = por %p166, %p167
      %p169 = scmp.ne.s32.totalorder %s157, %s158
      %p170 = scmp.eq.s32.totalorder %s24, 1
      %p171 = por %p169, %p170
      %p173 = scmp.ne.s32.totalorder %s158, %s172
      %p174 = scmp.eq.s32.totalorder %s24, 0
      %p175 = por %p173, %p174
      %s177 = sadd.s32 %s176, 1
      %p180 = scmp.eq.s32.totalorder %s18, 1
      %p181 = scmp.ne.s32.totalorder %s176, %s178
      %p182 = scmp.eq.s32.totalorder %s18, 0
      %p183 = por %p181, %p182
      %p184 = scmp.ne.s32.totalorder %s176, %s178
      %p185 = scmp.eq.s32.totalorder %s23, 1
      %p186 = por %p184, %p185
      %p187 = scmp.ne.s32.totalorder %s178, %s179
      %p188 = scmp.eq.s32.totalorder %s23, 0
      %p189 = por %p187, %p188
      %p190 = scmp.ne.s32.totalorder %s178, %s179
      %p191 = scmp.eq.s32.totalorder %s24, 1
      %p192 = por %p190, %p191
      %p194 = scmp.ne.s32.totalorder %s179, %s193
      %p195 = scmp.eq.s32.totalorder %s24, 0
      %p196 = por %p194, %p195
      %s197 = smul.u32 %s26, %s25
      %s198 = smul.u32 %s33, %s37
      %s199 = ssub.s32 %s197, %s198
      %p200 = scmp.eq.s32.totalorder %s199, 0
      %s202 = sadd.s32 %s201, 1
      %s203 = scalar_select %p200, %s201, %s202
      %p206 = pneg %p200
      %p207 = scmp.eq.s32.totalorder %s18, 1
      %p208 = por %p206, %p207
      %p209 = scmp.ne.s32.totalorder %s201, %s204
      %p210 = scmp.eq.s32.totalorder %s18, 0
      %p211 = por %p209, %p210
      %p212 = scmp.ne.s32.totalorder %s201, %s204
      %p213 = scmp.eq.s32.totalorder %s23, 1
      %p214 = por %p212, %p213
      %p215 = scmp.ne.s32.totalorder %s204, %s205
      %p216 = scmp.eq.s32.totalorder %s23, 0
      %p217 = por %p215, %p216
      %p218 = scmp.ne.s32.totalorder %s204, %s205
      %p219 = scmp.eq.s32.totalorder %s24, 1
      %p220 = por %p218, %p219
      %p222 = scmp.ne.s32.totalorder %s205, %s221
      %p223 = scmp.eq.s32.totalorder %s24, 0
      %p224 = por %p222, %p223
      %p225 = scmp.le.s32.totalorder 1, %s18
      %p226 = scmp.lt.s32.totalorder %s18, 3
      %p227 = pnand %p225, %p226
      %p228 = pneg %p227
      // Predicated region
      $region9: #{critic_forward.1} parent=5 // pred_check
        _
      $region10: #{critic_forward.1} parent=5 // pred_check_branch
        %230 = sbr.rel (%p227) target = $region12
      $region11: #{critic_forward.1} parent=5 // pred_region
        %s231 = ssub.s32 %s18, 1
        // Predicated region
        $region13: #{critic_forward.1} parent=11 // pred_check
          %p232 = pneg %p56
        $region14: #{critic_forward.1} parent=11 // pred_check_branch
          %234 = sbr.rel (%p232) target = $region16
        $region15: #{critic_forward.1} parent=11 // pred_region
          %p235 = scmp.lt.s32.totalorder %s28, 0
          %s236 = scalar_select %p235, %s28, 0
          %s237 = smul.addr %s236, 4
          %s238 = scalar_lea.vmem %s0, %s237
        $region16: #{critic_forward.1} parent=11 // pred_fallthru
          _
        // Predicated region
        $region17: #{critic_forward.1} parent=11 // pred_check
          %p239 = pneg %p105
        $region18: #{critic_forward.1} parent=11 // pred_check_branch
          %241 = sbr.rel (%p239) target = $region20
        $region19: #{critic_forward.1} parent=11 // pred_region
          _
        $region20: #{critic_forward.1} parent=11 // pred_fallthru
          _
        // Predicated region
        $region21: #{critic_forward.1} parent=11 // pred_check
          %p242 = pneg %p126
        $region22: #{critic_forward.1} parent=11 // pred_check_branch
          %244 = sbr.rel (%p242) target = $region24
        $region23: #{critic_forward.1} parent=11 // pred_region
          %s246 = ssub.s32 1024, 1024
          %247 = vsyncadd [#allocation5], %s246
          %s248 = sshll.u32 [#allocation4], 4
          %s249 = int_to_ptr.vmem [resolvable:$true] %s248
          %254 = dma.hbm_to_vmem [thread:$0]  %s3, 1024, %s249, [#allocation5], 64, 64, 4
        $region24: #{critic_forward.1} parent=11 // pred_fallthru
          _
        // Predicated region
        $region25: #{critic_forward.1} parent=11 // pred_check
          %p255 = pneg %p147
        $region26: #{critic_forward.1} parent=11 // pred_check_branch
          %257 = sbr.rel (%p255) target = $region28
        $region27: #{critic_forward.1} parent=11 // pred_region
          _
        $region28: #{critic_forward.1} parent=11 // pred_fallthru
          _
        // Predicated region
        $region29: #{critic_forward.1} parent=11 // pred_check
          %p258 = pneg %p168
        $region30: #{critic_forward.1} parent=11 // pred_check_branch
          %260 = sbr.rel (%p258) target = $region32
        $region31: #{critic_forward.1} parent=11 // pred_region
          %s262 = ssub.s32 1024, 1024
          %263 = vsyncadd [#allocation8], %s262
          %s264 = sshll.u32 [#allocation7], 4
          %s265 = int_to_ptr.vmem [resolvable:$true] %s264
          %270 = dma.hbm_to_vmem [thread:$0]  %s5, 1024, %s265, [#allocation8], 64, 64, 4
        $region32: #{critic_forward.1} parent=11 // pred_fallthru
          _
        // Predicated region
        $region33: #{critic_forward.1} parent=11 // pred_check
          %p271 = pneg %p189
        $region34: #{critic_forward.1} parent=11 // pred_check_branch
          %273 = sbr.rel (%p271) target = $region36
        $region35: #{critic_forward.1} parent=11 // pred_region
          _
        $region36: #{critic_forward.1} parent=11 // pred_fallthru
          _
      $region12: #{critic_forward.1} parent=5 // pred_fallthru
        _
      %p274 = scmp.lt.s32.totalorder %s18, 2
      // Predicated region
      $region37: #{critic_forward.1} parent=5 // pred_check
        %p275 = pneg %p274
      $region38: #{critic_forward.1} parent=5 // pred_check_branch
        %277 = sbr.rel (%p275) target = $region40
      $region39: #{critic_forward.1} parent=5 // pred_region
        // Predicated region
        $region41: #{critic_forward.1} parent=39 // pred_check
          %p278 = pneg %p78
        $region42: #{critic_forward.1} parent=39 // pred_check_branch
          %280 = sbr.rel (%p278) target = $region44
        $region43: #{critic_forward.1} parent=39 // pred_region
          %s281 = smul.u32 %s26, %s25
          %p282 = scmp.lt.s32.totalorder %s281, 0
          %s283 = scalar_select %p282, %s281, 0
          %s284 = smul.addr %s283, 4
          %s285 = scalar_lea.vmem %s1, %s284
          %s286 = smul.u32 %s26, %s25
        $region44: #{critic_forward.1} parent=39 // pred_fallthru
          _
      $region40: #{critic_forward.1} parent=5 // pred_fallthru
        _
      %p287 = scmp.le.s32.totalorder 1, %s18
      %p288 = scmp.lt.s32.totalorder %s18, 3
      %p289 = pnand %p287, %p288
      %p290 = pneg %p289
      // Predicated region
      $region45: #{critic_forward.1} parent=5 // pred_check
        _
      $region46: #{critic_forward.1} parent=5 // pred_check_branch
        %292 = sbr.rel (%p289) target = $region48
      $region47: #{critic_forward.1} parent=5 // pred_region
        %s293 = ssub.s32 %s18, 1
        // Predicated region
        $region49: #{critic_forward.1} parent=47 // pred_check
          %p294 = pneg %p126
        $region50: #{critic_forward.1} parent=47 // pred_check_branch
          %296 = sbr.rel (%p294) target = $region52
        $region51: #{critic_forward.1} parent=47 // pred_region
          %297 = dma.done [#allocation5], 1024
        $region52: #{critic_forward.1} parent=47 // pred_fallthru
          _
        // Predicated region
        $region53: #{critic_forward.1} parent=47 // pred_check
          %p298 = pneg %p168
        $region54: #{critic_forward.1} parent=47 // pred_check_branch
          %300 = sbr.rel (%p298) target = $region56
        $region55: #{critic_forward.1} parent=47 // pred_region
          %301 = dma.done [#allocation8], 1024
        $region56: #{critic_forward.1} parent=47 // pred_fallthru
          _
        %p302 = scmp.lt.s32.totalorder %s28, 0
        %s303 = scalar_select %p302, %s28, 0
        %s304 = smul.addr %s303, 4
        %s305 = scalar_lea.vmem %s0, %s304
        %p306 = pneg %p56
        %p307 = pneg %p53
        %s308 = smul.u32 %s28, %s27
        %p309 = scmp.lt.s32.totalorder %s308, 0
        %s310 = scalar_select %p309, %s308, 0
        %s311 = smul.addr %s310, 4
        %s312 = scalar_lea.vmem %s1, %s311
        %p313 = pneg %p84
        %p314 = pneg %p81
        %p315 = pneg %p105
        %p316 = pneg %p102
        %p317 = pneg %p126
        %p318 = pneg %p123
        %p319 = pneg %p147
        %p320 = pneg %p144
        %p321 = pneg %p168
        %p322 = pneg %p165
        %p323 = pneg %p189
        %p324 = pneg %p186
        %p325 = pneg %p217
        %p326 = pneg %p214
        %s327 = sand.u32 %s204, 1
        %s328 = scalar_lea.sflag [#allocation6], %s327
        %s329 = sand.u32 %s204, 1
        %s330 = smul.addr %s329, 8
        %s331 = scalar_lea.vmem [#allocation9], %s330
        %p332 = scmp.lt.s32.totalorder %s28, 0
        %s333 = scalar_select %p332, %s28, 0
        %s334 = smul.addr %s333, 4
        %s335 = scalar_lea.vmem %s0, %s334
        %s336 = smul.u32 %s28, %s27
        %p337 = scmp.lt.s32.totalorder %s336, 0
        %s338 = scalar_select %p337, %s336, 0
        %s339 = smul.addr %s338, 4
        %s340 = scalar_lea.vmem %s1, %s339
        %s341 = smul.u32 %s28, %s27
        %s342 = smul.u32 %s28, %s27
        %v344 = vld [vmem:[%s335] sm:$0xf]
        %v345 = vld [vmem:[%s2] sm:$0xf]
        %v346 = vld [vmem:[%s2 + $0x4] sm:$0xf]
        %v347 = vld [vmem:[%s2 + $0x8] sm:$0xf]
        %v348 = vld [vmem:[%s2 + $0xc] sm:$0xf]
        %v353 = vunpack.c.l.b16 %v345
        %v354 = vunpack.c.l.b16 %v346
        %v355 = vunpack.c.l.b16 %v347
        %v356 = vunpack.c.l.b16 %v348
        %v357 = vpack.c.b16 %v354, %v353
        %v358 = vpack.c.b16 %v356, %v355
        %vm361 = vcmask 261120
        %v363 = vsel %vm361, %v344, 0
        %365 = vmatprep.subr.bf16.mxu0 0
        %366 = vmatpush1.bf16.msra.mxu0 0
        %367 = vmatprep.subr.bf16.mxu0 0
        %368 = vmatpush1.bf16.msra.mxu0 0
        %369 = vmatprep.subr.bf16.mxu0 0
        %370 = vmatpush1.bf16.msra.mxu0 0
        %371 = vmatprep.subr.bf16.mxu0 0
        %372 = vmatpush1.bf16.msra.mxu0 0
        %373 = vmatprep.subr.bf16.mxu0 0
        %374 = vmatpush1.bf16.msra.mxu0 0
        %375 = vmatprep.subr.bf16.mxu0 0
        %376 = vmatpush1.bf16.msra.mxu0 0
        %377 = vmatprep.subr.bf16.mxu0 0
        %378 = vmatpush1.bf16.msra.mxu0 %v358
        %379 = vmatprep.subr.bf16.mxu0 0
        %380 = vmatpush1.bf16.msra.mxu0 %v357
        %381 = vmatprep.subr.bf16.mxu0 0
        %382 = vmatpush2.bf16.msra.mxu0 0
        %383 = vmatprep.subr.bf16.mxu0 0
        %384 = vmatpush2.bf16.msra.mxu0 0
        %385 = vmatprep.subr.bf16.mxu0 0
        %386 = vmatpush2.bf16.msra.mxu0 0
        %387 = vmatprep.subr.bf16.mxu0 0
        %388 = vmatpush2.bf16.msra.mxu0 0
        %389 = vmatprep.subr.bf16.mxu0 0
        %390 = vmatpush2.bf16.msra.mxu0 0
        %391 = vmatprep.subr.bf16.mxu0 0
        %392 = vmatpush2.bf16.msra.mxu0 0
        %393 = vmatprep.subr.bf16.mxu0 0
        %394 = vmatpush2.bf16.msra.mxu0 0
        %395 = vmatprep.subr.bf16.mxu0 0
        %396 = vmatpush2.bf16.msra.mxu0 0
        %397 = vmatprep.mubr.bf16.mxu0 0
        %398 = vmatmul.mubr.bf16.gmra.mxu0 %v363
        %v399 = vpop.f32.mrf.mxu0
        %v400 = vadd.f32 0.0, %v399
        %v401 = vpop.f32.mrf.mxu0
        %v402 = vpop.f32.mrf.mxu0
        %v403 = vpop.f32.mrf.mxu0
        %404 = vdwg.mxu0
        %p405 = scmp.eq.s32.totalorder %s27, 0
        %p406 = scmp.eq.s32.totalorder %s28, 0
        %p407 = pnand %p405, %p406
        %p408 = pneg %p407
        // Predicated region
        $region57: #{critic_forward.1} parent=47 // pred_check
          _
        $region58: #{critic_forward.1} parent=47 // pred_check_branch
          %410 = sbr.rel (%p407) target = $region60
        $region59: #{critic_forward.1} parent=47 // pred_region
          %411 = vst [vmem:[#allocation2] sm:$0x3] 0.0
        $region60: #{critic_forward.1} parent=47 // pred_fallthru
          _
        // Predicated region
        $region61: #{critic_forward.1} parent=47 // pred_check
          %p412 = pneg %p405
        $region62: #{critic_forward.1} parent=47 // pred_check_branch
          %414 = sbr.rel (%p412) target = $region64
        $region63: #{critic_forward.1} parent=47 // pred_region
          %v415 = vld [vmem:[#allocation2] sm:$0x1]
          %v416 = vrot.slane %v400, 4
          %v417 = vadd.f32 %v400, %v416
          %v418 = vrot.slane %v417, 2
          %v419 = vadd.f32 %v417, %v418
          %v420 = vrot.slane %v419, 1
          %v421 = vadd.f32 %v419, %v420
          %v422 = vadd.f32 %v415, %v421
          %423 = vst [vmem:[#allocation2] sm:$0x1] %v422
          %v424 = vld [vmem:[#allocation2 + $0x1] sm:$0x1]
          %v425 = vmul.f32 %v400, %v400
          %v426 = vrot.slane %v425, 4
          %v427 = vadd.f32 %v425, %v426
          %v428 = vrot.slane %v427, 2
          %v429 = vadd.f32 %v427, %v428
          %v430 = vrot.slane %v429, 1
          %v431 = vadd.f32 %v429, %v430
          %v432 = vadd.f32 %v424, %v431
          %433 = vst [vmem:[#allocation2 + $0x1] sm:$0x1] %v432
        $region64: #{critic_forward.1} parent=47 // pred_fallthru
          _
        %p434 = scmp.eq.s32.totalorder %s27, 1
        %p435 = pnand %p434, %p406
        %p436 = pneg %p435
        // Predicated region
        $region65: #{critic_forward.1} parent=47 // pred_check
          _
        $region66: #{critic_forward.1} parent=47 // pred_check_branch
          %438 = sbr.rel (%p435) target = $region68
        $region67: #{critic_forward.1} parent=47 // pred_region
          %v439 = vld [vmem:[#allocation2] sm:$0x1]
          %v440 = vmul.f32 %v439, 0.125
          %v441 = vld [vmem:[#allocation2 + $0x1] sm:$0x1]
          %v442 = vmul.f32 %v441, 0.125
          %v443 = vmul.f32 %v440, %v440
          %v444 = vsub.f32 %v442, %v443
          %v445 = vmax.f32 %v444, 0.0
          %v446 = vld [vmem:[%s6] sm:$0x1]
          %v447 = vld [vmem:[%s6 + $0x1] sm:$0x1]
          %v448 = vadd.f32 %v445, 1e-05
          %v449 = vrsqrt.pop %v448
          %v450 = vmul.f32 %v446, %v449
          %451 = vst [vmem:[#allocation3] sm:$0x1] %v450
          %v452 = vmul.f32 %v440, %v450
          %v453 = vsub.f32 %v447, %v452
          %454 = vst [vmem:[#allocation3 + $0x1] sm:$0x1] %v453
        $region68: #{critic_forward.1} parent=47 // pred_fallthru
          _
        // Predicated region
        $region69: #{critic_forward.1} parent=47 // pred_check
          %p455 = pneg %p434
        $region70: #{critic_forward.1} parent=47 // pred_check_branch
          %457 = sbr.rel (%p455) target = $region72
        $region71: #{critic_forward.1} parent=47 // pred_region
          %v458 = vld [vmem:[#allocation3] sm:$0x1]
          %v459 = vld [vmem:[#allocation3 + $0x1] sm:$0x1]
          %v460 = vlaneseq
          %v461 = vshrl.u32 %v460, 7
          %v462 = vsub.s32 0, %v461
          %v463 = vrot.slane %v458, %v462
          %v464 = vmul.f32 %v400, %v463
          %v465 = vlaneseq
          %v466 = vshrl.u32 %v465, 7
          %v467 = vsub.s32 0, %v466
          %v468 = vrot.slane %v459, %v467
          %v469 = vadd.f32 %v464, %v468
          %v470 = vmax.f32 %v469, 0.0
          %v471 = vpack.c.bf16 %v470, %v470
          %v472 = vld [vmem:[#allocation4] sm:$0xf]
          %v473 = vld [vmem:[#allocation4 + $0x4] sm:$0xf]
          %v474 = vld [vmem:[#allocation4 + $0x8] sm:$0xf]
          %v475 = vld [vmem:[#allocation4 + $0xc] sm:$0xf]
          %v476 = vld [vmem:[#allocation4 + $0x10] sm:$0xf]
          %v477 = vld [vmem:[#allocation4 + $0x14] sm:$0xf]
          %v478 = vld [vmem:[#allocation4 + $0x18] sm:$0xf]
          %v479 = vld [vmem:[#allocation4 + $0x1c] sm:$0xf]
          %v480 = vld [vmem:[#allocation4 + $0x20] sm:$0xf]
          %v481 = vld [vmem:[#allocation4 + $0x24] sm:$0xf]
          %v482 = vld [vmem:[#allocation4 + $0x28] sm:$0xf]
          %v483 = vld [vmem:[#allocation4 + $0x2c] sm:$0xf]
          %v484 = vld [vmem:[#allocation4 + $0x30] sm:$0xf]
          %v485 = vld [vmem:[#allocation4 + $0x34] sm:$0xf]
          %v486 = vld [vmem:[#allocation4 + $0x38] sm:$0xf]
          %v487 = vld [vmem:[#allocation4 + $0x3c] sm:$0xf]
          %v488 = vld [vmem:[%s340] sm:$0xf]
          %v489 = vld [vmem:[%s4] sm:$0xf]
          %v490 = vld [vmem:[%s4 + $0x4] sm:$0xf]
          %v493 = vunpack.c.l.b16 %v489
          %v494 = vunpack.c.l.b16 %v490
          %v495 = vpack.c.b16 %v494, %v493
          %vm497 = vcmask 130048
          %v499 = vsel %vm497, %v488, 0
          %501 = vmatprep.subr.bf16.mxu0 0
          %502 = vmatpush1.bf16.msra.mxu0 0
          %503 = vmatprep.subr.bf16.mxu0 0
          %504 = vmatpush1.bf16.msra.mxu0 0
          %505 = vmatprep.subr.bf16.mxu0 0
          %506 = vmatpush1.bf16.msra.mxu0 0
          %507 = vmatprep.subr.bf16.mxu0 0
          %508 = vmatpush1.bf16.msra.mxu0 0
          %509 = vmatprep.subr.bf16.mxu0 0
          %510 = vmatpush1.bf16.msra.mxu0 0
          %511 = vmatprep.subr.bf16.mxu0 0
          %512 = vmatpush1.bf16.msra.mxu0 0
          %513 = vmatprep.subr.bf16.mxu0 0
          %514 = vmatpush1.bf16.msra.mxu0 0
          %515 = vmatprep.subr.bf16.mxu0 0
          %516 = vmatpush1.bf16.msra.mxu0 %v495
          %517 = vmatprep.subr.bf16.mxu0 0
          %518 = vmatpush2.bf16.msra.mxu0 0
          %519 = vmatprep.subr.bf16.mxu0 0
          %520 = vmatpush2.bf16.msra.mxu0 0
          %521 = vmatprep.subr.bf16.mxu0 0
          %522 = vmatpush2.bf16.msra.mxu0 0
          %523 = vmatprep.subr.bf16.mxu0 0
          %524 = vmatpush2.bf16.msra.mxu0 0
          %525 = vmatprep.subr.bf16.mxu0 0
          %526 = vmatpush2.bf16.msra.mxu0 0
          %527 = vmatprep.subr.bf16.mxu0 0
          %528 = vmatpush2.bf16.msra.mxu0 0
          %529 = vmatprep.subr.bf16.mxu0 0
          %530 = vmatpush2.bf16.msra.mxu0 0
          %531 = vmatprep.subr.bf16.mxu0 0
          %532 = vmatpush2.bf16.msra.mxu0 0
          %533 = vmatprep.mubr.bf16.mxu0 0
          %534 = vmatmul.mubr.bf16.gmra.mxu0 %v499
          %v535 = vpop.f32.mrf.mxu0
          %v536 = vadd.f32 0.0, %v535
          %v537 = vpop.f32.mrf.mxu0
          %v538 = vpop.f32.mrf.mxu0
          %v539 = vpop.f32.mrf.mxu0
          %540 = vdwg.mxu0
          %v557 = vunpack.c.l.b16 %v472
          %v558 = vunpack.c.l.b16 %v473
          %v559 = vunpack.c.l.b16 %v474
          %v560 = vunpack.c.l.b16 %v475
          %v561 = vunpack.c.l.b16 %v476
          %v562 = vunpack.c.l.b16 %v477
          %v563 = vunpack.c.l.b16 %v478
          %v564 = vunpack.c.l.b16 %v479
          %v565 = vunpack.c.l.b16 %v480
          %v566 = vunpack.c.l.b16 %v481
          %v567 = vunpack.c.l.b16 %v482
          %v568 = vunpack.c.l.b16 %v483
          %v569 = vunpack.c.l.b16 %v484
          %v570 = vunpack.c.l.b16 %v485
          %v571 = vunpack.c.l.b16 %v486
          %v572 = vunpack.c.l.b16 %v487
          %v573 = vpack.c.b16 %v558, %v557
          %v574 = vpack.c.b16 %v560, %v559
          %v575 = vpack.c.b16 %v562, %v561
          %v576 = vpack.c.b16 %v564, %v563
          %v577 = vpack.c.b16 %v566, %v565
          %v578 = vpack.c.b16 %v568, %v567
          %v579 = vpack.c.b16 %v570, %v569
          %v580 = vpack.c.b16 %v572, %v571
          %589 = vmatprep.subr.bf16.mxu0 0
          %590 = vmatpush1.bf16.msra.mxu0 %v580
          %591 = vmatprep.subr.bf16.mxu0 0
          %592 = vmatpush1.bf16.msra.mxu0 %v579
          %593 = vmatprep.subr.bf16.mxu0 0
          %594 = vmatpush1.bf16.msra.mxu0 %v578
          %595 = vmatprep.subr.bf16.mxu0 0
          %596 = vmatpush1.bf16.msra.mxu0 %v577
          %597 = vmatprep.subr.bf16.mxu0 0
          %598 = vmatpush1.bf16.msra.mxu0 %v576
          %599 = vmatprep.subr.bf16.mxu0 0
          %600 = vmatpush1.bf16.msra.mxu0 %v575
          %601 = vmatprep.subr.bf16.mxu0 0
          %602 = vmatpush1.bf16.msra.mxu0 %v574
          %603 = vmatprep.subr.bf16.mxu0 0
          %604 = vmatpush1.bf16.msra.mxu0 %v573
          %605 = vmatprep.subr.bf16.mxu0 0
          %606 = vmatpush2.bf16.msra.mxu0 0
          %607 = vmatprep.subr.bf16.mxu0 0
          %608 = vmatpush2.bf16.msra.mxu0 0
          %609 = vmatprep.subr.bf16.mxu0 0
          %610 = vmatpush2.bf16.msra.mxu0 0
          %611 = vmatprep.subr.bf16.mxu0 0
          %612 = vmatpush2.bf16.msra.mxu0 0
          %613 = vmatprep.subr.bf16.mxu0 0
          %614 = vmatpush2.bf16.msra.mxu0 0
          %615 = vmatprep.subr.bf16.mxu0 0
          %616 = vmatpush2.bf16.msra.mxu0 0
          %617 = vmatprep.subr.bf16.mxu0 0
          %618 = vmatpush2.bf16.msra.mxu0 0
          %619 = vmatprep.subr.bf16.mxu0 0
          %620 = vmatpush2.bf16.msra.mxu0 0
          %621 = vmatprep.mubr.bf16.mxu0 0
          %622 = vmatmul.mubr.bf16.gmra.mxu0 %v471
          %v623 = vpop.f32.mrf.mxu0
          %v624 = vadd.f32 %v536, %v623
          %v625 = vpop.f32.mrf.mxu0
          %v626 = vpop.f32.mrf.mxu0
          %v627 = vpop.f32.mrf.mxu0
          %628 = vdwg.mxu0
          %v629 = vld [vmem:[%s6 + $0x2] sm:$0x1]
          %v630 = vlaneseq
          %v631 = vshrl.u32 %v630, 7
          %v632 = vsub.s32 0, %v631
          %v633 = vrot.slane %v629, %v632
          %v634 = vadd.f32 %v624, %v633
          %v635 = vmax.f32 %v634, 0.0
          %v636 = vpack.c.bf16 %v635, %v635
          %v637 = vld [vmem:[#allocation7] sm:$0xf]
          %v638 = vld [vmem:[#allocation7 + $0x4] sm:$0xf]
          %v639 = vld [vmem:[#allocation7 + $0x8] sm:$0xf]
          %v640 = vld [vmem:[#allocation7 + $0xc] sm:$0xf]
          %v641 = vld [vmem:[#allocation7 + $0x10] sm:$0xf]
          %v642 = vld [vmem:[#allocation7 + $0x14] sm:$0xf]
          %v643 = vld [vmem:[#allocation7 + $0x18] sm:$0xf]
          %v644 = vld [vmem:[#allocation7 + $0x1c] sm:$0xf]
          %v645 = vld [vmem:[#allocation7 + $0x20] sm:$0xf]
          %v646 = vld [vmem:[#allocation7 + $0x24] sm:$0xf]
          %v647 = vld [vmem:[#allocation7 + $0x28] sm:$0xf]
          %v648 = vld [vmem:[#allocation7 + $0x2c] sm:$0xf]
          %v649 = vld [vmem:[#allocation7 + $0x30] sm:$0xf]
          %v650 = vld [vmem:[#allocation7 + $0x34] sm:$0xf]
          %v651 = vld [vmem:[#allocation7 + $0x38] sm:$0xf]
          %v652 = vld [vmem:[#allocation7 + $0x3c] sm:$0xf]
          %v653 = vld [vmem:[%s6 + $0x3] sm:$0x1]
          %v654 = vlaneseq
          %v655 = vshrl.u32 %v654, 7
          %v656 = vsub.s32 0, %v655
          %v657 = vrot.slane %v653, %v656
          %v674 = vunpack.c.l.b16 %v637
          %v675 = vunpack.c.l.b16 %v638
          %v676 = vunpack.c.l.b16 %v639
          %v677 = vunpack.c.l.b16 %v640
          %v678 = vunpack.c.l.b16 %v641
          %v679 = vunpack.c.l.b16 %v642
          %v680 = vunpack.c.l.b16 %v643
          %v681 = vunpack.c.l.b16 %v644
          %v682 = vunpack.c.l.b16 %v645
          %v683 = vunpack.c.l.b16 %v646
          %v684 = vunpack.c.l.b16 %v647
          %v685 = vunpack.c.l.b16 %v648
          %v686 = vunpack.c.l.b16 %v649
          %v687 = vunpack.c.l.b16 %v650
          %v688 = vunpack.c.l.b16 %v651
          %v689 = vunpack.c.l.b16 %v652
          %v690 = vpack.c.b16 %v675, %v674
          %v691 = vpack.c.b16 %v677, %v676
          %v692 = vpack.c.b16 %v679, %v678
          %v693 = vpack.c.b16 %v681, %v680
          %v694 = vpack.c.b16 %v683, %v682
          %v695 = vpack.c.b16 %v685, %v684
          %v696 = vpack.c.b16 %v687, %v686
          %v697 = vpack.c.b16 %v689, %v688
          %706 = vmatprep.subr.bf16.mxu0 0
          %707 = vmatpush1.bf16.msra.mxu0 %v697
          %708 = vmatprep.subr.bf16.mxu0 0
          %709 = vmatpush1.bf16.msra.mxu0 %v696
          %710 = vmatprep.subr.bf16.mxu0 0
          %711 = vmatpush1.bf16.msra.mxu0 %v695
          %712 = vmatprep.subr.bf16.mxu0 0
          %713 = vmatpush1.bf16.msra.mxu0 %v694
          %714 = vmatprep.subr.bf16.mxu0 0
          %715 = vmatpush1.bf16.msra.mxu0 %v693
          %716 = vmatprep.subr.bf16.mxu0 0
          %717 = vmatpush1.bf16.msra.mxu0 %v692
          %718 = vmatprep.subr.bf16.mxu0 0
          %719 = vmatpush1.bf16.msra.mxu0 %v691
          %720 = vmatprep.subr.bf16.mxu0 0
          %721 = vmatpush1.bf16.msra.mxu0 %v690
          %722 = vmatprep.subr.bf16.mxu0 0
          %723 = vmatpush2.bf16.msra.mxu0 0
          %724 = vmatprep.subr.bf16.mxu0 0
          %725 = vmatpush2.bf16.msra.mxu0 0
          %726 = vmatprep.subr.bf16.mxu0 0
          %727 = vmatpush2.bf16.msra.mxu0 0
          %728 = vmatprep.subr.bf16.mxu0 0
          %729 = vmatpush2.bf16.msra.mxu0 0
          %730 = vmatprep.subr.bf16.mxu0 0
          %731 = vmatpush2.bf16.msra.mxu0 0
          %732 = vmatprep.subr.bf16.mxu0 0
          %733 = vmatpush2.bf16.msra.mxu0 0
          %734 = vmatprep.subr.bf16.mxu0 0
          %735 = vmatpush2.bf16.msra.mxu0 0
          %736 = vmatprep.subr.bf16.mxu0 0
          %737 = vmatpush2.bf16.msra.mxu0 0
          %738 = vmatprep.mubr.bf16.mxu0 0
          %739 = vmatmul.mubr.bf16.gmra.mxu0 %v636
          %v740 = vpop.f32.mrf.mxu0
          %v741 = vadd.f32 %v657, %v740
          %v742 = vpop.f32.mrf.mxu0
          %v743 = vpop.f32.mrf.mxu0
          %v744 = vpop.f32.mrf.mxu0
          %745 = vdwg.mxu0
          %v746 = vxor.u32 %v741, 2147483648
          %v747 = vmul.f32 %v746, 1.442695
          %v748 = vpow.pop %v747
          %v749 = vadd.f32 %v748, 1.0
          %v750 = vrcp.pop %v749
          %v751 = vmul.f32 1.0, %v750
          %752 = vst [vmem:[%s331] sm:$0xff] %v751
        $region72: #{critic_forward.1} parent=47 // pred_fallthru
          _
        %s753 = sand.u32 %s204, 1
        %s754 = scalar_lea.sflag [#allocation6], %s753
        %s755 = sand.u32 %s204, 1
        %s756 = smul.addr %s755, 8
        %s757 = scalar_lea.vmem [#allocation9], %s756
        // Predicated region
        $region73: #{critic_forward.1} parent=47 // pred_check
          %p758 = pneg %p214
        $region74: #{critic_forward.1} parent=47 // pred_check_branch
          %760 = sbr.rel (%p758) target = $region76
        $region75: #{critic_forward.1} parent=47 // pred_region
          %s761 = smul.u32 %s28, %s27
          %s763 = ssub.s32 128, 128
          %764 = vsyncadd %s754, %s763
          %s765 = smul.addr %s761, 128
          %s766 = scalar_lea.hbm %s7, %s765
          %s768 = sshll.u32 %s757, 4
          %s769 = int_to_ptr.vmem [resolvable:$true] %s768
          %771 = dma.vmem_to_hbm [thread:$0]  %s769, 128, %s766, %s754
        $region76: #{critic_forward.1} parent=47 // pred_fallthru
          _
      $region48: #{critic_forward.1} parent=5 // pred_fallthru
        _
      %p772 = scmp.le.s32.totalorder 2, %s18
      // Predicated region
      $region77: #{critic_forward.1} parent=5 // pred_check
        %p773 = pneg %p772
      $region78: #{critic_forward.1} parent=5 // pred_check_branch
        %775 = sbr.rel (%p773) target = $region80
      $region79: #{critic_forward.1} parent=5 // pred_region
        %s776 = ssub.s32 %s18, 2
        // Predicated region
        $region81: #{critic_forward.1} parent=79 // pred_check
          %p777 = pneg %p220
        $region82: #{critic_forward.1} parent=79 // pred_check_branch
          %779 = sbr.rel (%p777) target = $region84
        $region83: #{critic_forward.1} parent=79 // pred_region
          %s780 = sand.u32 %s205, 1
          %s781 = scalar_lea.sflag [#allocation6], %s780
          %s782 = sand.u32 %s205, 1
          %s783 = smul.addr %s782, 8
          %s784 = scalar_lea.vmem [#allocation9], %s783
          %785 = dma.done %s781, 128
        $region84: #{critic_forward.1} parent=79 // pred_fallthru
          _
      $region80: #{critic_forward.1} parent=5 // pred_fallthru
        _
    $region6: #{critic_forward.1} parent=1 // loop_footer
      %s22 = sadd.s32 1, %s18
    $region7: #{critic_forward.1} parent=1 // loop_footer_branch
      %17 = sbr.rel target = $region3
    $region8: #{critic_forward.1} parent=1 // loop_exit
      _
    %786 = vsyncpa [#allocation5], 1
    %s787 = scalar_lea.sflag [#allocation5], 1
    %788 = vsyncpa %s787, 1
    %789 = vsyncpa [#allocation8], 1
    %790 = vsyncpa [#allocation6], 1
    %s791 = scalar_lea.sflag [#allocation6], 1
    %792 = vsyncpa %s791, 1

</llo_original>
